<compile_context>
chip_gen: v7x
topology: tpu7x:2x2x1
jax: 0.10.0
libtpu: 0.0.40
codegen_flags: <defaults>
</compile_context>

<pallas_src>
import functools

import jax
import jax.numpy as jnp
from jax.experimental import pallas as pl
from jax.experimental.pallas import tpu as pltpu


OUT_PAD = 128      # lane-dense padded output width (single unmasked store)
SLAB_W = 128       # lane width of the pre-packed weight slab


# ----------------------------------------------------------------------------
# Fused kernel: whole NN forward (hidden stack + mean head + quantile heads)
# in one launch, reading x plus ONE pre-packed weight slab.
# ----------------------------------------------------------------------------
def _fused_nn_kernel(x_ref, slab_ref, out_ref, *, layout, num_hidden,
                     activation, has_quantiles):
    """out_ref is a 128-lane padded slab:
         cols 0:T            -> mean head
         cols (i+1)T:(i+2)T  -> quantile head i (already sign-combined w/ mean)
         cols out_cols:128   -> zeros (padding; stripped host-side)
    Final slab = x @ w_xq + h_last @ w_head + b_head  (pure VPU add on top of
    two MXU pushes; no cross-lane shuffles, no masked stores).
    """
    def seg(name):
        r, h, w = layout[name]          # static python ints -> zero-cost views
        return slab_ref[r:r + h, 0:w]

    x = x_ref[...]

    # Hidden stack (dropout == 0.0 -> no dropout layer; norm=False).
    h = x
    for l in range(num_hidden):
        h = jnp.dot(h, seg(f"w{l}"), preferred_element_type=jnp.float32) \
            + seg(f"b{l}")
        if activation == "relu":
            h = jnp.maximum(h, 0.0)
        elif activation == "tanh":
            h = jnp.tanh(h)
        # None / 'none' -> identity

    # Mean + all quantile heads in one lane-dense (final_in, 128) matmul.
    acc = jnp.dot(h, seg("w_head"), preferred_element_type=jnp.float32) \
        + seg("b_head")
    if has_quantiles:
        # x-part of the quantile heads, pre-sign-scaled and aligned to the same
        # output columns at prepack time -> plain add, no lane relocation.
        acc = acc + jnp.dot(x, seg("w_xq"), preferred_element_type=jnp.float32)

    out_ref[...] = acc.astype(out_ref.dtype)   # single unmasked 128-lane store


# ----------------------------------------------------------------------------
# One-time weight prepack (hoisted out of the forward path)
# ----------------------------------------------------------------------------
def prepack_params(params, features_dim, targets_dim, multi_quantile):
    """Pack all module weights into a single (rows, 128) f32 slab + static
    layout metadata.  Runs once at setup; the forward pass then needs only two
    DMAs (x + slab)."""
    multi_quantile = list(multi_quantile or [])
    F, T = features_dim, targets_dim
    n_q = len(multi_quantile)
    out_cols = (1 + n_q) * T
    assert out_cols <= OUT_PAD
    # TODO(synk): for (1+n_q)*T > 128, split the packed head across several
    # 128-lane tiles.

    hidden = params["hidden"]
    w_out, b_out = params["output"]

    head_w, head_b, xq_w = [w_out], [b_out], []
    for q in multi_quantile:
        w_q, b_q = params["quantiles"][q]
        w_qx, w_qh = w_q[:F], w_q[F:]
        if q > 0.5:
            m, s = 1.0, 1.0          # mean + q_out
        elif q < 0.5:
            m, s = 1.0, -1.0         # mean - q_out
        else:
            m, s = 0.0, 1.0          # q == 0.5: q_out only
        head_w.append(m * w_out + s * w_qh)
        head_b.append(m * b_out + s * b_q)
        xq_w.append(s * w_qx)

    w_head = jnp.concatenate(head_w, axis=1)                 # (final_in, out_cols)
    b_head = jnp.concatenate(head_b, axis=1)                 # (1, out_cols)
    w_head = jnp.pad(w_head, ((0, 0), (0, OUT_PAD - out_cols)))
    b_head = jnp.pad(b_head, ((0, 0), (0, OUT_PAD - out_cols)))

    segments = []
    if n_q:
        w_xq = jnp.concatenate(xq_w, axis=1)                 # (F, n_q*T)
        # Left-pad T zero cols so the x-part lands on output cols T:(1+n_q)*T.
        w_xq = jnp.pad(w_xq, ((0, 0), (T, OUT_PAD - out_cols)))
        segments.append(("w_xq", w_xq))
    for l, (w, b) in enumerate(hidden):
        segments.append((f"w{l}", w))
        segments.append((f"b{l}", b))
    segments.append(("w_head", w_head))
    segments.append(("b_head", b_head))

    layout, rows, row = {}, [], 0
    for name, arr in segments:
        arr = jnp.asarray(arr, jnp.float32)
        h, w = arr.shape
        assert w <= SLAB_W
        layout[name] = (row, h, w)
        rows.append(jnp.pad(arr, ((0, 0), (0, SLAB_W - w))))
        pad_r = (-h) % 8                 # keep every segment sublane-aligned
        if pad_r:
            rows.append(jnp.zeros((pad_r, SLAB_W), jnp.float32))
        row += h + pad_r
    slab = jnp.concatenate(rows, axis=0)                     # (136, 128) here

    # NOTE: for v6e/v7x at larger batch, cast `slab` (and x) to bfloat16 here;
    # the kernel already accumulates in f32 via preferred_element_type.
    meta = dict(layout=layout, num_hidden=len(hidden), targets_dim=T,
                out_cols=out_cols, has_quantiles=bool(n_q),
                multi_quantile=multi_quantile)
    return slab, meta


# ----------------------------------------------------------------------------
# Forward wrapper: one fused pallas_call
# ----------------------------------------------------------------------------
def nn_forward(slab, meta, x, activation_fn):
    M = x.shape[0]
    T = meta["targets_dim"]

    kernel = functools.partial(
        _fused_nn_kernel,
        layout=meta["layout"],
        num_hidden=meta["num_hidden"],
        activation=activation_fn,
        has_quantiles=meta["has_quantiles"],
    )

    # Single fused launch: at batch=8 the kernel is launch/DMA-overhead bound,
    # so everything lives in one grid step with only two input DMAs.
    # TODO(synk): if batch scales to >~512 rows, tile M into a 'parallel' grid
    # axis (constant-index slab BlockSpec stays VMEM-resident) to use both
    # v7x TensorCores and enable row-block double-buffering.
    packed = pl.pallas_call(
        kernel,
        out_shape=jax.ShapeDtypeStruct((M, OUT_PAD), x.dtype),
        grid=(1,),
        in_specs=[
            pl.BlockSpec(x.shape, lambda i: (0, 0)),
            pl.BlockSpec(slab.shape, lambda i: (0, 0)),
        ],
        out_specs=pl.BlockSpec((M, OUT_PAD), lambda i: (0, 0)),
        compiler_params=pltpu.CompilerParams(
            dimension_semantics=("arbitrary",)),
    )(x, slab)

    # Strip lane padding and split the packed slab [mean | q_0 | q_1 | ...]
    # into the module's output dict (float keys, matching the PyTorch module).
    out = {"main": packed[:, :T]}
    for i, q in enumerate(meta["multi_quantile"]):
        out[q] = packed[:, (i + 1) * T:(i + 2) * T]
    return out


# ----------------------------------------------------------------------------
# Parameter construction (deterministic, mirrors pytorch_init_linear semantics)
# ----------------------------------------------------------------------------
def make_params(key, features_dim, targets_dim, hidden, multi_quantile):
    params = {"hidden": [], "quantiles": {}}
    in_size = features_dim
    for h in hidden:
        key, wk = jax.random.split(key)
        w = jax.random.uniform(wk, (in_size, h), jnp.float32, -0.1, 0.1)
        b = jnp.full((1, h), 0.1, jnp.float32)              # b_init=('constant', 0.1)
        params["hidden"].append((w, b))
        in_size = h
    final_in = hidden[-1] if hidden else features_dim
    key, wk = jax.random.split(key)
    params["output"] = (
        jax.random.uniform(wk, (final_in, targets_dim), jnp.float32, -0.1, 0.1),
        jnp.zeros((1, targets_dim), jnp.float32),            # f_b_init=('constant', 0)
    )
    for q in multi_quantile or []:
        key, wk = jax.random.split(key)
        params["quantiles"][q] = (
            jax.random.uniform(
                wk, (features_dim + final_in, targets_dim), jnp.float32, -0.1, 0.1),
            jnp.zeros((1, targets_dim), jnp.float32),
        )
    return params


# ----------------------------------------------------------------------------
if __name__ == "__main__":
    batch = 8
    features_dim = 32
    targets_dim = 8
    hidden = [32, 16]
    activation_fn = "relu"
    multi_quantile = [0.1, 0.9]

    key = jax.random.PRNGKey(0)
    key, xk = jax.random.split(key)
    x = jax.random.normal(xk, (batch, features_dim), jnp.float32)

    params = make_params(key, features_dim, targets_dim, hidden, multi_quantile)

    # One-time prepack (hoisted out of the per-call forward path).
    slab, meta = prepack_params(params, features_dim, targets_dim, multi_quantile)
    jax.block_until_ready(slab)

    out = nn_forward(slab, meta, x, activation_fn)
    # Block on a list of values: the dict has mixed key types ("main" + float
    # quantile keys, matching the PyTorch module) and cannot be flattened as a
    # sorted-key pytree.
    jax.block_until_ready(list(out.values()))

    # Pure-JAX reference of the original (unpacked) module math.
    def ref_forward(params, x):
        h = x
        for (w, b) in params["hidden"]:
            h = jnp.maximum(h @ w + b, 0.0)
        mean = h @ params["output"][0] + params["output"][1]
        ref = {"main": mean}
        q_in = jnp.concatenate([x, h], axis=1)
        for q, (w, b) in params["quantiles"].items():
            qo = q_in @ w + b
            ref[q] = mean + qo if q > 0.5 else (mean - qo if q < 0.5 else qo)
        return ref

    ref = ref_forward(params, x)
    for k in out:
        assert jnp.allclose(out[k], ref[k], atol=1e-5, rtol=1e-5), f"mismatch on {k}"

    print("KERNEL_OK")
</pallas_src>

<mosaic_0001>
module attributes {stable_mosaic.version = 11 : i64} {
  func.func @_fused_nn_kernel(%arg0: i32, %arg1: memref<8x32xf32, #tpu.memory_space<vmem>>, %arg2: memref<136x128xf32, #tpu.memory_space<vmem>>, %arg3: memref<8x128xf32, #tpu.memory_space<vmem>>) attributes {dimension_semantics = [#tpu.dimension_semantics<arbitrary>], iteration_bounds = array<i64: 1>, scalar_prefetch = 0 : i64, scratch_operands = 0 : i64, tpu.core_type = #tpu.core_type<tc>, window_params = [{pipeline_mode = #tpu.pipeline_mode<synchronous>, transform_indices = @transform_0, window_bounds = array<i64: 8, 32>}, {pipeline_mode = #tpu.pipeline_mode<synchronous>, transform_indices = @transform_1, window_bounds = array<i64: 136, 128>}, {pipeline_mode = #tpu.pipeline_mode<synchronous>, transform_indices = @transform_2, window_bounds = array<i64: 8, 128>}]} {
    %c0 = arith.constant 0 : index
    %c0_0 = arith.constant 0 : index
    %0 = vector.load %arg1[%c0, %c0_0] : memref<8x32xf32, #tpu.memory_space<vmem>>, vector<8x32xf32>
    %c32 = arith.constant 32 : index
    %c0_1 = arith.constant 0 : index
    %1 = vector.load %arg2[%c32, %c0_1] : memref<136x128xf32, #tpu.memory_space<vmem>>, vector<32x32xf32>
    %cst = arith.constant dense<0.000000e+00> : vector<8x32xf32>
    %2 = tpu.matmul %0, %1, %cst {dimension_numbers = #tpu.dot_dimension_numbers<[1], [0], [0], [1], [0, 0, 1, 1], [], []>} : vector<8x32xf32>, vector<32x32xf32>, vector<8x32xf32> -> vector<8x32xf32>
    %c64 = arith.constant 64 : index
    %c0_2 = arith.constant 0 : index
    %3 = vector.load %arg2[%c64, %c0_2] : memref<136x128xf32, #tpu.memory_space<vmem>>, vector<1x32xf32>
    %4 = vector.broadcast %3 : vector<1x32xf32> to vector<8x32xf32>
    %5 = arith.addf %2, %4 : vector<8x32xf32>
    %cst_3 = arith.constant 0.000000e+00 : f32
    %6 = vector.broadcast %cst_3 : f32 to vector<8x32xf32>
    %7 = arith.maximumf %5, %6 : vector<8x32xf32>
    %c72 = arith.constant 72 : index
    %c0_4 = arith.constant 0 : index
    %8 = vector.load %arg2[%c72, %c0_4] : memref<136x128xf32, #tpu.memory_space<vmem>>, vector<32x16xf32>
    %cst_5 = arith.constant dense<0.000000e+00> : vector<8x16xf32>
    %9 = tpu.matmul %7, %8, %cst_5 {dimension_numbers = #tpu.dot_dimension_numbers<[1], [0], [0], [1], [0, 0, 1, 1], [], []>} : vector<8x32xf32>, vector<32x16xf32>, vector<8x16xf32> -> vector<8x16xf32>
    %c104 = arith.constant 104 : index
    %c0_6 = arith.constant 0 : index
    %10 = vector.load %arg2[%c104, %c0_6] : memref<136x128xf32, #tpu.memory_space<vmem>>, vector<1x16xf32>
    %11 = vector.broadcast %10 : vector<1x16xf32> to vector<8x16xf32>
    %12 = arith.addf %9, %11 : vector<8x16xf32>
    %cst_7 = arith.constant 0.000000e+00 : f32
    %13 = vector.broadcast %cst_7 : f32 to vector<8x16xf32>
    %14 = arith.maximumf %12, %13 : vector<8x16xf32>
    %c112 = arith.constant 112 : index
    %c0_8 = arith.constant 0 : index
    %15 = vector.load %arg2[%c112, %c0_8] : memref<136x128xf32, #tpu.memory_space<vmem>>, vector<16x128xf32>
    %cst_9 = arith.constant dense<0.000000e+00> : vector<8x128xf32>
    %16 = tpu.matmul %14, %15, %cst_9 {dimension_numbers = #tpu.dot_dimension_numbers<[1], [0], [0], [1], [0, 0, 1, 1], [], []>} : vector<8x16xf32>, vector<16x128xf32>, vector<8x128xf32> -> vector<8x128xf32>
    %c128 = arith.constant 128 : index
    %c0_10 = arith.constant 0 : index
    %17 = vector.load %arg2[%c128, %c0_10] : memref<136x128xf32, #tpu.memory_space<vmem>>, vector<1x128xf32>
    %18 = vector.broadcast %17 : vector<1x128xf32> to vector<8x128xf32>
    %19 = arith.addf %16, %18 : vector<8x128xf32>
    %c0_11 = arith.constant 0 : index
    %c0_12 = arith.constant 0 : index
    %20 = vector.load %arg2[%c0_11, %c0_12] : memref<136x128xf32, #tpu.memory_space<vmem>>, vector<32x128xf32>
    %cst_13 = arith.constant dense<0.000000e+00> : vector<8x128xf32>
    %21 = tpu.matmul %0, %20, %cst_13 {dimension_numbers = #tpu.dot_dimension_numbers<[1], [0], [0], [1], [0, 0, 1, 1], [], []>} : vector<8x32xf32>, vector<32x128xf32>, vector<8x128xf32> -> vector<8x128xf32>
    %22 = arith.addf %19, %21 : vector<8x128xf32>
    %c0_14 = arith.constant 0 : index
    %c0_15 = arith.constant 0 : index
    %23 = vector.load %arg3[%c0_14, %c0_15] : memref<8x128xf32, #tpu.memory_space<vmem>>, vector<8x128xf32>
    tpu.vector_store %arg3[%c0_14, %c0_15], %22 {strides = array<i32>} : memref<8x128xf32, #tpu.memory_space<vmem>>, vector<8x128xf32>,
    return
  }
  func.func @transform_0(%arg0: i32) -> (i32, i32) {
    %c0_i32 = arith.constant 0 : i32
    %c0_i32_0 = arith.constant 0 : i32
    %c0_i32_1 = arith.constant 0 : i32
    return %c0_i32, %c0_i32_0 : i32, i32
  }
  func.func @transform_1(%arg0: i32) -> (i32, i32) {
    %c0_i32 = arith.constant 0 : i32
    %c0_i32_0 = arith.constant 0 : i32
    %c0_i32_1 = arith.constant 0 : i32
    return %c0_i32, %c0_i32_0 : i32, i32
  }
  func.func @transform_2(%arg0: i32) -> (i32, i32) {
    %c0_i32 = arith.constant 0 : i32
    %c0_i32_0 = arith.constant 0 : i32
    %c0_i32_1 = arith.constant 0 : i32
    return %c0_i32, %c0_i32_0 : i32, i32
  }
}

</mosaic_0001>

<llo_original>
// kernel: tpu_custom_call.1
$region0: #{tpu_custom_call.1}
  #allocation0 [shape = 'u32[]', space=smem, size = 0x4, offset = 0x4, fixed_abs, tag = 'smem constant byte address 0x4 - core index']
  #allocation1 [shape = 'u32[144,128]{1,0:T(1,128)}', space=vmem, size = 0x12000, scoped, tag = 'internal scratch']
  %s0 = inlined_call_operand.hbm [shape: f32[8,32], index: 0, kind: input, shape index: {}]
  %s1 = inlined_call_operand.hbm [shape: f32[136,128], index: 1, kind: input, shape index: {}]
  %s2 = inlined_call_operand.hbm [shape: f32[8,128], index: 2, kind: output, shape index: {}]
  %s3 = sld [smem:[#allocation0]]
  $region26: #{tpu_custom_call.1} parent=0
    _
  %s5 = ssub.s32 1, %s3
  %s6 = scalar_select 0, %s5, %s3
  $region1: #{tpu_custom_call.1} parent=0
    #allocation2 [shape = 'u8[4096]{0}', space=vmem, size = 0x1000, scoped, tag = 'input window, operand 0, single buffered']
    #allocation3 [shape = 's32[1]{0}', space=sflag, size = 0x4, scoped, tag = 'scoped memory for tpu_custom_call.1']
    #allocation4 [shape = 's32[1]{0}', space=sflag, size = 0x4, scoped, tag = 'scoped memory for tpu_custom_call.1']
    #allocation5 [shape = 'u8[69632]{0}', space=vmem, size = 0x11000, scoped, tag = 'input window, operand 1, single buffered']
    #allocation6 [shape = 's32[1]{0}', space=sflag, size = 0x4, scoped, tag = 'scoped memory for tpu_custom_call.1']
    #allocation7 [shape = 'u8[4096]{0}', space=vmem, size = 0x1000, scoped, tag = 'output window, operand 0, single buffered']
    %7 = vsyncpa [#allocation3], 0
    %8 = vsyncpa [#allocation6], 0
    %9 = vsyncpa [#allocation4], 0
    // Predicated region
    $region2: #{tpu_custom_call.1} parent=1 // pred_check
      _
    $region3: #{tpu_custom_call.1} parent=1 // pred_check_branch
      %11 = sbr.rel (0) target = $region5
    $region4: #{tpu_custom_call.1} parent=1 // pred_region
      %s13 = ssub.s32 128, 128
      %14 = vsyncadd [#allocation3], %s13
      %s16 = sshll.u32 [#allocation2], 4
      %s17 = int_to_ptr.vmem [resolvable:$true] %s16
      %19 = dma.hbm_to_vmem [thread:$0]  %s0, 128, %s17, [#allocation3]
    $region5: #{tpu_custom_call.1} parent=1 // pred_fallthru
      _
    // Predicated region
    $region6: #{tpu_custom_call.1} parent=1 // pred_check
      _
    $region7: #{tpu_custom_call.1} parent=1 // pred_check_branch
      %21 = sbr.rel (0) target = $region9
    $region8: #{tpu_custom_call.1} parent=1 // pred_region
      %s23 = ssub.s32 2176, 2176
      %24 = vsyncadd [#allocation6], %s23
      %s25 = sshll.u32 [#allocation5], 4
      %s26 = int_to_ptr.vmem [resolvable:$true] %s25
      %31 = dma.hbm_to_vmem [thread:$0]  %s1, 2176, %s26, [#allocation6], 128, 128, 8
    $region9: #{tpu_custom_call.1} parent=1 // pred_fallthru
      _
    // Predicated region
    $region10: #{tpu_custom_call.1} parent=1 // pred_check
      _
    $region11: #{tpu_custom_call.1} parent=1 // pred_check_branch
      %33 = sbr.rel (0) target = $region13
    $region12: #{tpu_custom_call.1} parent=1 // pred_region
      %34 = dma.done [#allocation3], 128
    $region13: #{tpu_custom_call.1} parent=1 // pred_fallthru
      _
    // Predicated region
    $region14: #{tpu_custom_call.1} parent=1 // pred_check
      _
    $region15: #{tpu_custom_call.1} parent=1 // pred_check_branch
      %36 = sbr.rel (0) target = $region17
    $region16: #{tpu_custom_call.1} parent=1 // pred_region
      %37 = dma.done [#allocation6], 2176
    $region17: #{tpu_custom_call.1} parent=1 // pred_fallthru
      _
    %v38 = vld [vmem:[#allocation2] sm:$0xff]
    %v39 = vld [vmem:[#allocation5 + $0x20] sm:$0xff]
    %v40 = vld [vmem:[#allocation5 + $0x28] sm:$0xff]
    %v41 = vld [vmem:[#allocation5 + $0x30] sm:$0xff]
    %v42 = vld [vmem:[#allocation5 + $0x38] sm:$0xff]
    %v43 = vld [vmem:[#allocation5 + $0x40] sm:$0x1]
    %v44 = vlaneseq
    %v45 = vshrl.u32 %v44, 7
    %v46 = vsub.s32 0, %v45
    %v47 = vrot.slane %v43, %v46
    %vm48 = vcmask 261120
    %v50 = vsel %vm48, %v38, 0
    %52 = vmatprep.subr.mxu0 0.0
    %53 = vmatpush1.msra.mxu0 %v39
    %54 = vmatprep.subr.mxu0 0.0
    %55 = vmatpush1.msra.mxu0 %v40
    %56 = vmatprep.subr.mxu0 0.0
    %57 = vmatpush1.msra.mxu0 %v41
    %58 = vmatprep.subr.mxu0 0.0
    %59 = vmatpush1.msra.mxu0 %v42
    %60 = vmatprep.subr.mxu0 0.0
    %61 = vmatpush1.msra.mxu0 0.0
    %62 = vmatprep.subr.mxu0 0.0
    %63 = vmatpush1.msra.mxu0 0.0
    %64 = vmatprep.subr.mxu0 0.0
    %65 = vmatpush1.msra.mxu0 0.0
    %66 = vmatprep.subr.mxu0 0.0
    %67 = vmatpush1.msra.mxu0 0.0
    %68 = vmatprep.subr.mxu0 0.0
    %69 = vmatpush1.msra.mxu0 0.0
    %70 = vmatprep.subr.mxu0 0.0
    %71 = vmatpush1.msra.mxu0 0.0
    %72 = vmatprep.subr.mxu0 0.0
    %73 = vmatpush1.msra.mxu0 0.0
    %74 = vmatprep.subr.mxu0 0.0
    %75 = vmatpush1.msra.mxu0 0.0
    %76 = vmatprep.subr.mxu0 0.0
    %77 = vmatpush1.msra.mxu0 0.0
    %78 = vmatprep.subr.mxu0 0.0
    %79 = vmatpush1.msra.mxu0 0.0
    %80 = vmatprep.subr.mxu0 0.0
    %81 = vmatpush1.msra.mxu0 0.0
    %82 = vmatprep.subr.mxu0 0.0
    %83 = vmatpush1.msra.mxu0 0.0
    %84 = vmatprep.subr.mxu0 0.0
    %85 = vmatpush1.msra.mxu0 0.0
    %86 = vmatprep.subr.mxu0 0.0
    %87 = vmatpush1.msra.mxu0 0.0
    %88 = vmatprep.subr.mxu0 0.0
    %89 = vmatpush1.msra.mxu0 0.0
    %90 = vmatprep.subr.mxu0 0.0
    %91 = vmatpush1.msra.mxu0 0.0
    %92 = vmatprep.subr.mxu0 0.0
    %93 = vmatpush1.msra.mxu0 0.0
    %94 = vmatprep.subr.mxu0 0.0
    %95 = vmatpush1.msra.mxu0 0.0
    %96 = vmatprep.subr.mxu0 0.0
    %97 = vmatpush1.msra.mxu0 0.0
    %98 = vmatprep.subr.mxu0 0.0
    %99 = vmatpush1.msra.mxu0 0.0
    %100 = vmatprep.subr.mxu0 0.0
    %101 = vmatpush1.msra.mxu0 0.0
    %102 = vmatprep.subr.mxu0 0.0
    %103 = vmatpush1.msra.mxu0 0.0
    %104 = vmatprep.subr.mxu0 0.0
    %105 = vmatpush1.msra.mxu0 0.0
    %106 = vmatprep.subr.mxu0 0.0
    %107 = vmatpush1.msra.mxu0 0.0
    %108 = vmatprep.subr.mxu0 0.0
    %109 = vmatpush1.msra.mxu0 0.0
    %110 = vmatprep.subr.mxu0 0.0
    %111 = vmatpush1.msra.mxu0 0.0
    %112 = vmatprep.subr.mxu0 0.0
    %113 = vmatpush1.msra.mxu0 0.0
    %114 = vmatprep.subr.mxu0 0.0
    %115 = vmatpush1.msra.mxu0 0.0
    %116 = vmatprep.mubr.f32.mxu0 0.0
    %117 = vmatmul.mubr.f32.gmra.mrb[0].mxu0 %v50
    %v118 = vpop.f32.mrb[0].mxu0
    %v119 = vadd.f32 %v47, %v118
    %v120 = vpop.f32.mrb[0].mxu0
    %121 = vdwg.mxu0
    %v122 = vmax.f32 %v119, 0.0
    %v123 = vld [vmem:[#allocation5 + $0x48] sm:$0xff]
    %v124 = vld [vmem:[#allocation5 + $0x50] sm:$0xff]
    %v125 = vld [vmem:[#allocation5 + $0x58] sm:$0xff]
    %v126 = vld [vmem:[#allocation5 + $0x60] sm:$0xff]
    %v127 = vld [vmem:[#allocation5 + $0x68] sm:$0x1]
    %v128 = vlaneseq
    %v129 = vshrl.u32 %v128, 7
    %v130 = vsub.s32 0, %v129
    %v131 = vrot.slane %v127, %v130
    %v133 = vsel %vm48, %v122, 0
    %135 = vmatprep.subr.mxu0 0.0
    %136 = vmatpush1.msra.mxu0 %v123
    %137 = vmatprep.subr.mxu0 0.0
    %138 = vmatpush1.msra.mxu0 %v124
    %139 = vmatprep.subr.mxu0 0.0
    %140 = vmatpush1.msra.mxu0 %v125
    %141 = vmatprep.subr.mxu0 0.0
    %142 = vmatpush1.msra.mxu0 %v126
    %143 = vmatprep.subr.mxu0 0.0
    %144 = vmatpush1.msra.mxu0 0.0
    %145 = vmatprep.subr.mxu0 0.0
    %146 = vmatpush1.msra.mxu0 0.0
    %147 = vmatprep.subr.mxu0 0.0
    %148 = vmatpush1.msra.mxu0 0.0
    %149 = vmatprep.subr.mxu0 0.0
    %150 = vmatpush1.msra.mxu0 0.0
    %151 = vmatprep.subr.mxu0 0.0
    %152 = vmatpush1.msra.mxu0 0.0
    %153 = vmatprep.subr.mxu0 0.0
    %154 = vmatpush1.msra.mxu0 0.0
    %155 = vmatprep.subr.mxu0 0.0
    %156 = vmatpush1.msra.mxu0 0.0
    %157 = vmatprep.subr.mxu0 0.0
    %158 = vmatpush1.msra.mxu0 0.0
    %159 = vmatprep.subr.mxu0 0.0
    %160 = vmatpush1.msra.mxu0 0.0
    %161 = vmatprep.subr.mxu0 0.0
    %162 = vmatpush1.msra.mxu0 0.0
    %163 = vmatprep.subr.mxu0 0.0
    %164 = vmatpush1.msra.mxu0 0.0
    %165 = vmatprep.subr.mxu0 0.0
    %166 = vmatpush1.msra.mxu0 0.0
    %167 = vmatprep.subr.mxu0 0.0
    %168 = vmatpush1.msra.mxu0 0.0
    %169 = vmatprep.subr.mxu0 0.0
    %170 = vmatpush1.msra.mxu0 0.0
    %171 = vmatprep.subr.mxu0 0.0
    %172 = vmatpush1.msra.mxu0 0.0
    %173 = vmatprep.subr.mxu0 0.0
    %174 = vmatpush1.msra.mxu0 0.0
    %175 = vmatprep.subr.mxu0 0.0
    %176 = vmatpush1.msra.mxu0 0.0
    %177 = vmatprep.subr.mxu0 0.0
    %178 = vmatpush1.msra.mxu0 0.0
    %179 = vmatprep.subr.mxu0 0.0
    %180 = vmatpush1.msra.mxu0 0.0
    %181 = vmatprep.subr.mxu0 0.0
    %182 = vmatpush1.msra.mxu0 0.0
    %183 = vmatprep.subr.mxu0 0.0
    %184 = vmatpush1.msra.mxu0 0.0
    %185 = vmatprep.subr.mxu0 0.0
    %186 = vmatpush1.msra.mxu0 0.0
    %187 = vmatprep.subr.mxu0 0.0
    %188 = vmatpush1.msra.mxu0 0.0
    %189 = vmatprep.subr.mxu0 0.0
    %190 = vmatpush1.msra.mxu0 0.0
    %191 = vmatprep.subr.mxu0 0.0
    %192 = vmatpush1.msra.mxu0 0.0
    %193 = vmatprep.subr.mxu0 0.0
    %194 = vmatpush1.msra.mxu0 0.0
    %195 = vmatprep.subr.mxu0 0.0
    %196 = vmatpush1.msra.mxu0 0.0
    %197 = vmatprep.subr.mxu0 0.0
    %198 = vmatpush1.msra.mxu0 0.0
    %199 = vmatprep.mubr.f32.mxu0 0.0
    %200 = vmatmul.mubr.f32.gmra.mrb[0].mxu0 %v133
    %v201 = vpop.f32.mrb[0].mxu0
    %v202 = vadd.f32 %v131, %v201
    %v203 = vpop.f32.mrb[0].mxu0
    %204 = vdwg.mxu0
    %v205 = vmax.f32 %v202, 0.0
    %v206 = vld [vmem:[#allocation5 + $0x70] sm:$0xff]
    %v207 = vld [vmem:[#allocation5 + $0x78] sm:$0xff]
    %v208 = vld [vmem:[#allocation5 + $0x80] sm:$0x1]
    %v209 = vlaneseq
    %v210 = vshrl.u32 %v209, 7
    %v211 = vsub.s32 0, %v210
    %v212 = vrot.slane %v208, %v211
    %vm213 = vcmask 130048
    %v215 = vsel %vm213, %v205, 0
    %217 = vmatprep.subr.mxu0 0.0
    %218 = vmatpush1.msra.mxu0 %v206
    %219 = vmatprep.subr.mxu0 0.0
    %220 = vmatpush1.msra.mxu0 %v207
    %221 = vmatprep.subr.mxu0 0.0
    %222 = vmatpush1.msra.mxu0 0.0
    %223 = vmatprep.subr.mxu0 0.0
    %224 = vmatpush1.msra.mxu0 0.0
    %225 = vmatprep.subr.mxu0 0.0
    %226 = vmatpush1.msra.mxu0 0.0
    %227 = vmatprep.subr.mxu0 0.0
    %228 = vmatpush1.msra.mxu0 0.0
    %229 = vmatprep.subr.mxu0 0.0
    %230 = vmatpush1.msra.mxu0 0.0
    %231 = vmatprep.subr.mxu0 0.0
    %232 = vmatpush1.msra.mxu0 0.0
    %233 = vmatprep.subr.mxu0 0.0
    %234 = vmatpush1.msra.mxu0 0.0
    %235 = vmatprep.subr.mxu0 0.0
    %236 = vmatpush1.msra.mxu0 0.0
    %237 = vmatprep.subr.mxu0 0.0
    %238 = vmatpush1.msra.mxu0 0.0
    %239 = vmatprep.subr.mxu0 0.0
    %240 = vmatpush1.msra.mxu0 0.0
    %241 = vmatprep.subr.mxu0 0.0
    %242 = vmatpush1.msra.mxu0 0.0
    %243 = vmatprep.subr.mxu0 0.0
    %244 = vmatpush1.msra.mxu0 0.0
    %245 = vmatprep.subr.mxu0 0.0
    %246 = vmatpush1.msra.mxu0 0.0
    %247 = vmatprep.subr.mxu0 0.0
    %248 = vmatpush1.msra.mxu0 0.0
    %249 = vmatprep.subr.mxu0 0.0
    %250 = vmatpush1.msra.mxu0 0.0
    %251 = vmatprep.subr.mxu0 0.0
    %252 = vmatpush1.msra.mxu0 0.0
    %253 = vmatprep.subr.mxu0 0.0
    %254 = vmatpush1.msra.mxu0 0.0
    %255 = vmatprep.subr.mxu0 0.0
    %256 = vmatpush1.msra.mxu0 0.0
    %257 = vmatprep.subr.mxu0 0.0
    %258 = vmatpush1.msra.mxu0 0.0
    %259 = vmatprep.subr.mxu0 0.0
    %260 = vmatpush1.msra.mxu0 0.0
    %261 = vmatprep.subr.mxu0 0.0
    %262 = vmatpush1.msra.mxu0 0.0
    %263 = vmatprep.subr.mxu0 0.0
    %264 = vmatpush1.msra.mxu0 0.0
    %265 = vmatprep.subr.mxu0 0.0
    %266 = vmatpush1.msra.mxu0 0.0
    %267 = vmatprep.subr.mxu0 0.0
    %268 = vmatpush1.msra.mxu0 0.0
    %269 = vmatprep.subr.mxu0 0.0
    %270 = vmatpush1.msra.mxu0 0.0
    %271 = vmatprep.subr.mxu0 0.0
    %272 = vmatpush1.msra.mxu0 0.0
    %273 = vmatprep.subr.mxu0 0.0
    %274 = vmatpush1.msra.mxu0 0.0
    %275 = vmatprep.subr.mxu0 0.0
    %276 = vmatpush1.msra.mxu0 0.0
    %277 = vmatprep.subr.mxu0 0.0
    %278 = vmatpush1.msra.mxu0 0.0
    %279 = vmatprep.subr.mxu0 0.0
    %280 = vmatpush1.msra.mxu0 0.0
    %281 = vmatprep.mubr.f32.mxu0 0.0
    %282 = vmatmul.mubr.f32.gmra.mrb[0].mxu0 %v215
    %v283 = vpop.f32.mrb[0].mxu0
    %v284 = vadd.f32 %v212, %v283
    %v285 = vpop.f32.mrb[0].mxu0
    %286 = vdwg.mxu0
    %v287 = vld [vmem:[#allocation5] sm:$0xff]
    %v288 = vld [vmem:[#allocation5 + $0x8] sm:$0xff]
    %v289 = vld [vmem:[#allocation5 + $0x10] sm:$0xff]
    %v290 = vld [vmem:[#allocation5 + $0x18] sm:$0xff]
    %291 = vmatprep.subr.mxu0 0.0
    %292 = vmatpush1.msra.mxu0 %v287
    %293 = vmatprep.subr.mxu0 0.0
    %294 = vmatpush1.msra.mxu0 %v288
    %295 = vmatprep.subr.mxu0 0.0
    %296 = vmatpush1.msra.mxu0 %v289
    %297 = vmatprep.subr.mxu0 0.0
    %298 = vmatpush1.msra.mxu0 %v290
    %299 = vmatprep.subr.mxu0 0.0
    %300 = vmatpush1.msra.mxu0 0.0
    %301 = vmatprep.subr.mxu0 0.0
    %302 = vmatpush1.msra.mxu0 0.0
    %303 = vmatprep.subr.mxu0 0.0
    %304 = vmatpush1.msra.mxu0 0.0
    %305 = vmatprep.subr.mxu0 0.0
    %306 = vmatpush1.msra.mxu0 0.0
    %307 = vmatprep.subr.mxu0 0.0
    %308 = vmatpush1.msra.mxu0 0.0
    %309 = vmatprep.subr.mxu0 0.0
    %310 = vmatpush1.msra.mxu0 0.0
    %311 = vmatprep.subr.mxu0 0.0
    %312 = vmatpush1.msra.mxu0 0.0
    %313 = vmatprep.subr.mxu0 0.0
    %314 = vmatpush1.msra.mxu0 0.0
    %315 = vmatprep.subr.mxu0 0.0
    %316 = vmatpush1.msra.mxu0 0.0
    %317 = vmatprep.subr.mxu0 0.0
    %318 = vmatpush1.msra.mxu0 0.0
    %319 = vmatprep.subr.mxu0 0.0
    %320 = vmatpush1.msra.mxu0 0.0
    %321 = vmatprep.subr.mxu0 0.0
    %322 = vmatpush1.msra.mxu0 0.0
    %323 = vmatprep.subr.mxu0 0.0
    %324 = vmatpush1.msra.mxu0 0.0
    %325 = vmatprep.subr.mxu0 0.0
    %326 = vmatpush1.msra.mxu0 0.0
    %327 = vmatprep.subr.mxu0 0.0
    %328 = vmatpush1.msra.mxu0 0.0
    %329 = vmatprep.subr.mxu0 0.0
    %330 = vmatpush1.msra.mxu0 0.0
    %331 = vmatprep.subr.mxu0 0.0
    %332 = vmatpush1.msra.mxu0 0.0
    %333 = vmatprep.subr.mxu0 0.0
    %334 = vmatpush1.msra.mxu0 0.0
    %335 = vmatprep.subr.mxu0 0.0
    %336 = vmatpush1.msra.mxu0 0.0
    %337 = vmatprep.subr.mxu0 0.0
    %338 = vmatpush1.msra.mxu0 0.0
    %339 = vmatprep.subr.mxu0 0.0
    %340 = vmatpush1.msra.mxu0 0.0
    %341 = vmatprep.subr.mxu0 0.0
    %342 = vmatpush1.msra.mxu0 0.0
    %343 = vmatprep.subr.mxu0 0.0
    %344 = vmatpush1.msra.mxu0 0.0
    %345 = vmatprep.subr.mxu0 0.0
    %346 = vmatpush1.msra.mxu0 0.0
    %347 = vmatprep.subr.mxu0 0.0
    %348 = vmatpush1.msra.mxu0 0.0
    %349 = vmatprep.subr.mxu0 0.0
    %350 = vmatpush1.msra.mxu0 0.0
    %351 = vmatprep.subr.mxu0 0.0
    %352 = vmatpush1.msra.mxu0 0.0
    %353 = vmatprep.subr.mxu0 0.0
    %354 = vmatpush1.msra.mxu0 0.0
    %355 = vmatprep.mubr.f32.mxu0 0.0
    %356 = vmatmul.mubr.f32.gmra.mrb[0].mxu0 %v50
    %v357 = vpop.f32.mrb[0].mxu0
    %v358 = vadd.f32 0.0, %v357
    %v359 = vpop.f32.mrb[0].mxu0
    %360 = vdwg.mxu0
    %v361 = vadd.f32 %v284, %v358
    %362 = vst [vmem:[#allocation7] sm:$0xff] %v361
    // Predicated region
    $region18: #{tpu_custom_call.1} parent=1 // pred_check
      _
    $region19: #{tpu_custom_call.1} parent=1 // pred_check_branch
      %364 = sbr.rel (0) target = $region21
    $region20: #{tpu_custom_call.1} parent=1 // pred_region
      %s366 = ssub.s32 128, 128
      %367 = vsyncadd [#allocation4], %s366
      %s369 = sshll.u32 [#allocation7], 4
      %s370 = int_to_ptr.vmem [resolvable:$true] %s369
      %372 = dma.vmem_to_hbm [thread:$0]  %s370, 128, %s2, [#allocation4]
    $region21: #{tpu_custom_call.1} parent=1 // pred_fallthru
      _
    // Predicated region
    $region22: #{tpu_custom_call.1} parent=1 // pred_check
      _
    $region23: #{tpu_custom_call.1} parent=1 // pred_check_branch
      %374 = sbr.rel (0) target = $region25
    $region24: #{tpu_custom_call.1} parent=1 // pred_region
      %375 = dma.done [#allocation4], 128
    $region25: #{tpu_custom_call.1} parent=1 // pred_fallthru
      _
    %376 = vsyncpa [#allocation3], 1
    %377 = vsyncpa [#allocation6], 1
    %378 = vsyncpa [#allocation4], 1

</llo_original>
